<compile_context>
chip_gen: v5e
topology: v5e:2x2
jax: 0.10.0
libtpu: 0.0.40
codegen_flags: <defaults>
</compile_context>

<pallas_src>
import functools

import jax
import jax.numpy as jnp
from jax.experimental import pallas as pl
from jax.experimental.pallas import tpu as pltpu


_USE_BF16_MXU = False   # opt-in: bf16 MXU operands (faster, slightly off fp32)


def _round_up(x, m):
    return ((x + m - 1) // m) * m


def _vmem_limit_bytes():
    """Generation-aware scoped-VMEM limit (128 MiB phys on v5e/v6e, 64 on v7x)."""
    cap = 64 * 1024 * 1024
    try:
        cap = int(getattr(pltpu.get_tpu_info(), "vmem_capacity_bytes", cap))
    except Exception:
        pass
    return min(cap * 3 // 4, 100 * 1024 * 1024)


def _mxu(x):
    return x.astype(jnp.bfloat16) if _USE_BF16_MXU else x


# ---------------------------------------------------------------------------
# Kernel 1: complex linear  y = x @ W^T + b   (Gauss 3-dot, K-tiled)
# ---------------------------------------------------------------------------
def _cplx_linear_kernel(xr_ref, xi_ref, wtr_ref, wti_ref, br_ref, bi_ref,
                        yr_ref, yi_ref, acc_r, acc_i):
    @pl.when(pl.program_id(2) == 0)
    def _():
        acc_r[...] = jnp.zeros_like(acc_r)
        acc_i[...] = jnp.zeros_like(acc_i)

    xr = xr_ref[...]
    xi = xi_ref[...]
    wr = wtr_ref[...]
    wi = wti_ref[...]
    # Gauss trick: only two weight planes streamed; (wr+wi)/(xr+xi) are VPU
    # adds that hide under the MXU-bound step.
    rr = jnp.dot(_mxu(xr), _mxu(wr), preferred_element_type=jnp.float32)
    ii = jnp.dot(_mxu(xi), _mxu(wi), preferred_element_type=jnp.float32)
    m = jnp.dot(_mxu(xr + xi), _mxu(wr + wi), preferred_element_type=jnp.float32)
    acc_r[...] += rr - ii
    acc_i[...] += m - rr - ii

    @pl.when(pl.program_id(2) == pl.num_programs(2) - 1)
    def _():
        yr_ref[...] = acc_r[...] + br_ref[...]
        yi_ref[...] = acc_i[...] + bi_ref[...]


def _linear_tiles(rows, in_dim, out_dim, budget):
    tm = 512 if rows >= 512 else (256 if rows >= 256 else _round_up(max(rows, 1), 8))
    if out_dim <= 512:
        tn = out_dim
    else:
        tn = next((t for t in (512, 256, 128) if out_dim % t == 0), 256)
    if in_dim <= 1024:
        tk = in_dim
    else:
        tk = next((t for t in (512, 256, 128) if in_dim % t == 0), in_dim)

    def cost(tm_, tn_, tk_):
        # double-buffered x / w / y blocks + 2 fp32 accumulators + bias
        return 4 * (4 * tm_ * tk_ + 4 * tk_ * tn_ + 4 * tm_ * tn_
                    + 2 * tm_ * tn_ + 4 * tn_)

    while cost(tm, tn, tk) > budget:
        if tk % 256 == 0 and tk > 256:
            tk //= 2
        elif tm % 16 == 0 and tm > 16:
            tm //= 2
        elif tn % 256 == 0 and tn > 128:
            tn //= 2
        else:
            break
    return tm, tn, tk


def cplx_linear(xr, xi, w_r, w_i, b_r, b_i, *, vmem_limit):
    """Complex F.linear with torch-layout weight (out, in) and bias (out,)."""
    rows, in_dim = xr.shape
    out_dim = w_r.shape[0]

    tm, tn, tk = _linear_tiles(rows, in_dim, out_dim, budget=vmem_limit // 2)
    rows_p = _round_up(rows, tm)
    out_p = _round_up(out_dim, tn)

    def pad_rows(a):
        return jnp.pad(a, ((0, rows_p - rows), (0, 0))) if rows_p != rows else a

    def pad_cols(a):
        return jnp.pad(a, ((0, 0), (0, out_p - out_dim))) if out_p != out_dim else a

    xr_p = pad_rows(xr)
    xi_p = pad_rows(xi)
    wtr = pad_cols(w_r.T)                     # (in, out_p)
    wti = pad_cols(w_i.T)
    br = pad_cols(b_r.reshape(1, out_dim))
    bi = pad_cols(b_i.reshape(1, out_dim))

    grid = (rows_p // tm, out_p // tn, in_dim // tk)
    x_spec = pl.BlockSpec((tm, tk), lambda i, j, k: (i, k))
    w_spec = pl.BlockSpec((tk, tn), lambda i, j, k: (k, j))
    b_spec = pl.BlockSpec((1, tn), lambda i, j, k: (0, j))
    y_spec = pl.BlockSpec((tm, tn), lambda i, j, k: (i, j))

    yr, yi = pl.pallas_call(
        _cplx_linear_kernel,
        grid=grid,
        in_specs=[x_spec, x_spec, w_spec, w_spec, b_spec, b_spec],
        out_specs=[y_spec, y_spec],
        out_shape=(jax.ShapeDtypeStruct((rows_p, out_p), jnp.float32),
                   jax.ShapeDtypeStruct((rows_p, out_p), jnp.float32)),
        scratch_shapes=[pltpu.VMEM((tm, tn), jnp.float32),
                        pltpu.VMEM((tm, tn), jnp.float32)],
        compiler_params=pltpu.CompilerParams(
            dimension_semantics=("parallel", "parallel", "arbitrary"),
            vmem_limit_bytes=vmem_limit),
    )(xr_p, xi_p, wtr, wti, br, bi)

    if rows_p != rows or out_p != out_dim:
        yr = yr[:rows, :out_dim]
        yi = yi[:rows, :out_dim]
    return yr, yi


# ---------------------------------------------------------------------------
# Kernel 2 (pass 1): per-(batch, q-tile) score min/max partials.
# real+imag of the non-conjugated complex q k^T:
#     qr @ (kr+ki)^T + qi @ (kr-ki)^T      (2 MXU passes instead of 4)
# ---------------------------------------------------------------------------
def _minmax_kernel(qr_ref, qi_ref, kr_ref, ki_ref, mn_ref, mx_ref):
    kr = kr_ref[...]
    ki = ki_ref[...]
    s = (jnp.einsum('hqd,hkd->hqk', _mxu(qr_ref[...]), _mxu(kr + ki),
                    preferred_element_type=jnp.float32)
         + jnp.einsum('hqd,hkd->hqk', _mxu(qi_ref[...]), _mxu(kr - ki),
                      preferred_element_type=jnp.float32))
    mn_ref[...] = jnp.broadcast_to(jnp.min(s), mn_ref.shape)
    mx_ref[...] = jnp.broadcast_to(jnp.max(s), mx_ref.shape)


# ---------------------------------------------------------------------------
# Kernel 3 (pass 2): recompute scores, global min/max normalize, head-average,
# attn = w @ v (weights are real -> two real matmuls on vr / vi refs).
# ---------------------------------------------------------------------------
def _attend_kernel(nm_ref, qr_ref, qi_ref, kr_ref, ki_ref, vr_ref, vi_ref,
                   ar_ref, ai_ref, wavg_ref, *, num_heads):
    mn = nm_ref[0:1, 0:1].reshape(1, 1, 1)       # global min
    inv = nm_ref[0:1, 1:2].reshape(1, 1, 1)      # 1 / (max - min)
    kr = kr_ref[...]
    ki = ki_ref[...]
    s = (jnp.einsum('hqd,hkd->hqk', _mxu(qr_ref[...]), _mxu(kr + ki),
                    preferred_element_type=jnp.float32)
         + jnp.einsum('hqd,hkd->hqk', _mxu(qi_ref[...]), _mxu(kr - ki),
                      preferred_element_type=jnp.float32))
    w = (s - mn) * inv                                          # (H, tq, S)
    wavg_ref[...] = jnp.sum(w, axis=0, keepdims=True) * (1.0 / num_heads)
    ar_ref[...] = jnp.einsum('hqk,hkd->hqd', _mxu(w), _mxu(vr_ref[...]),
                             preferred_element_type=jnp.float32)
    ai_ref[...] = jnp.einsum('hqk,hkd->hqd', _mxu(w), _mxu(vi_ref[...]),
                             preferred_element_type=jnp.float32)


def _pick_q_tile(H, T, S, D, budget):
    cands = [t for t in (512, 256, 128, 64, 32, 16, 8) if t <= T and T % t == 0]
    if not cands:
        cands = [T]     # TODO(synk): pad/mask ragged T instead of a full block
    for tq in cands:
        io = 2 * (2 * H * tq * D + 4 * H * S * D) + 2 * (2 * H * tq * D + tq * S)
        mid = 3 * H * tq * S
        if 4 * (io + mid) <= budget:
            return tq
    return cands[-1]


# ---------------------------------------------------------------------------
# Wrapper: projections + two-pass attention (no fp32 score HBM round trip).
# ---------------------------------------------------------------------------
def c_multihead_attention(x, params, num_heads):
    T, B, E = x.shape
    H = num_heads
    D = E // H
    assert D * H == E, "embed_dim must be divisible by num_heads"
    BH = B * H
    S = T                                    # src_len == tgt_len (no bias_kv)
    R = T * B

    vmem_limit = _vmem_limit_bytes()

    xr = jnp.real(x).astype(jnp.float32).reshape(R, E)
    xi = jnp.imag(x).astype(jnp.float32).reshape(R, E)

    # ---- in_proj: (R, E) -> (R, 3E) complex ----
    pr, pi = cplx_linear(xr, xi, params["in_w_r"], params["in_w_i"],
                         params["in_b_r"], params["in_b_i"],
                         vmem_limit=vmem_limit)

    # (R, 3E) -> (3, B*H, T, D); the q/k/v plane split is folded into the
    # attention BlockSpec index maps (no per-plane XLA slices).
    def to_planes(p):
        return p.reshape(T, B, 3, H, D).transpose(2, 1, 3, 0, 4).reshape(3, BH, T, D)

    pr3 = to_planes(pr)
    pi3 = to_planes(pi)

    tq = _pick_q_tile(H, T, S, D, budget=vmem_limit // 2)
    gq = T // tq
    grid = (B, gq)

    def q_spec(plane):
        return pl.BlockSpec((None, H, tq, D), lambda b, qi, p=plane: (p, b, qi, 0))

    def kv_spec(plane):
        return pl.BlockSpec((None, H, S, D), lambda b, qi, p=plane: (p, b, 0, 0))

    mm_spec = pl.BlockSpec((1, 1, 8, 128), lambda b, qi: (b, qi, 0, 0))
    mm_shape = jax.ShapeDtypeStruct((B, gq, 8, 128), jnp.float32)

    # ---- pass 1: min/max partials (scores are recomputed in pass 2) ----
    mins, maxs = pl.pallas_call(
        _minmax_kernel,
        grid=grid,
        in_specs=[q_spec(0), q_spec(0), kv_spec(1), kv_spec(1)],
        out_specs=[mm_spec, mm_spec],
        out_shape=(mm_shape, mm_shape),
        compiler_params=pltpu.CompilerParams(
            dimension_semantics=("parallel", "parallel"),
            vmem_limit_bytes=vmem_limit),
    )(pr3, pi3, pr3, pi3)

    gmin = jnp.min(mins)
    gmax = jnp.max(maxs)
    # NOTE: q * head_dim**-0.5 is dropped; min/max normalization is invariant
    # to the positive scale so the outputs are unchanged.
    # TODO(synk): gmax == gmin yields inf/nan, matching the PyTorch reference.
    nm = jnp.pad(jnp.stack([gmin, 1.0 / (gmax - gmin)]).reshape(1, 2),
                 ((0, 0), (0, 126))).astype(jnp.float32)

    # ---- pass 2: recompute scores, normalize, head-average, attn = w @ v ----
    a_r, a_i, wavg = pl.pallas_call(
        functools.partial(_attend_kernel, num_heads=H),
        grid=grid,
        in_specs=[pl.BlockSpec((1, 128), lambda b, qi: (0, 0)),
                  q_spec(0), q_spec(0), kv_spec(1), kv_spec(1),
                  kv_spec(2), kv_spec(2)],
        out_specs=[pl.BlockSpec((H, tq, D), lambda b, qi: (b, qi, 0)),
                   pl.BlockSpec((H, tq, D), lambda b, qi: (b, qi, 0)),
                   pl.BlockSpec((1, tq, S), lambda b, qi: (b, qi, 0))],
        out_shape=(jax.ShapeDtypeStruct((BH, T, D), jnp.float32),
                   jax.ShapeDtypeStruct((BH, T, D), jnp.float32),
                   jax.ShapeDtypeStruct((B, T, S), jnp.float32)),
        compiler_params=pltpu.CompilerParams(
            dimension_semantics=("parallel", "parallel"),
            vmem_limit_bytes=vmem_limit),
    )(nm, pr3, pi3, pr3, pi3, pr3, pi3)

    # (B*H, T, D) -> (T*B, E) per plane (one transpose each)
    def from_heads(a):
        return a.reshape(B, H, T, D).transpose(2, 0, 1, 3).reshape(R, E)

    # ---- out_proj (complex linear) ----
    o_r, o_i = cplx_linear(from_heads(a_r), from_heads(a_i),
                           params["out_w_r"], params["out_w_i"],
                           params["out_b_r"], params["out_b_i"],
                           vmem_limit=vmem_limit)
    attn = jax.lax.complex(o_r, o_i).reshape(T, B, E)
    attn_weights = jax.lax.complex(wavg, jnp.zeros_like(wavg))
    return attn, attn_weights


# ---------------------------------------------------------------------------
# Deterministic synthetic parameters (shapes from __init__; xavier-style)
# ---------------------------------------------------------------------------
def init_params(key, embed_dim):
    E = embed_dim
    k1, k2, k3, k4 = jax.random.split(key, 4)
    a_in = (6.0 / (3 * E + E)) ** 0.5
    a_out = (6.0 / (E + E)) ** 0.5
    return dict(
        in_w_r=jax.random.uniform(k1, (3 * E, E), jnp.float32, -a_in, a_in),
        in_w_i=jax.random.uniform(k2, (3 * E, E), jnp.float32, -a_in, a_in),
        in_b_r=jnp.zeros((3 * E,), jnp.float32),
        in_b_i=jnp.zeros((3 * E,), jnp.float32),
        out_w_r=jax.random.uniform(k3, (E, E), jnp.float32, -a_out, a_out),
        out_w_i=jax.random.uniform(k4, (E, E), jnp.float32, -a_out, a_out),
        out_b_r=jnp.zeros((E,), jnp.float32),
        out_b_i=jnp.zeros((E,), jnp.float32),
    )


# ---------------------------------------------------------------------------
# Pure-JAX reference (mirrors the PyTorch forward with module defaults)
# ---------------------------------------------------------------------------
def _reference(x, params, num_heads):
    T, B, E = x.shape
    H = num_heads
    D = E // H
    w_in = params["in_w_r"] + 1j * params["in_w_i"]
    b_in = params["in_b_r"] + 1j * params["in_b_i"]
    w_out = params["out_w_r"] + 1j * params["out_w_i"]
    b_out = params["out_b_r"] + 1j * params["out_b_i"]

    p = x.reshape(T * B, E) @ w_in.T + b_in
    q, k, v = jnp.split(p.reshape(T, B, 3 * E), 3, axis=-1)
    q = q * (float(D) ** -0.5)

    def heads(t):
        return t.reshape(T, B * H, D).transpose(1, 0, 2)

    q, k, v = heads(q), heads(k), heads(v)
    aw = jnp.einsum('bqd,bkd->bqk', q, k)                 # complex, no conj
    aw = jnp.real(aw) + jnp.imag(aw)
    aw = (aw - aw.min()) / (aw.max() - aw.min())
    attn = jnp.einsum('bqk,bkd->bqd', aw.astype(x.dtype), v)
    attn = attn.transpose(1, 0, 2).reshape(T, B, E)
    attn = attn @ w_out.T + b_out
    aw_avg = (aw.reshape(B, H, T, T).sum(axis=1) / H).astype(x.dtype)
    return attn, aw_avg


if __name__ == "__main__":
    jax.config.update("jax_default_matmul_precision", "highest")

    key = jax.random.PRNGKey(0)
    kx_r, kx_i, kp = jax.random.split(key, 3)
    T, B, E, H = 8, 2, 32, 4   # seq=8, batch=2, embed_dim=32, heads=4 (D=8)

    x = jax.lax.complex(
        jax.random.normal(kx_r, (T, B, E), jnp.float32),
        jax.random.normal(kx_i, (T, B, E), jnp.float32),
    )
    params = init_params(kp, E)

    attn, attn_weights = c_multihead_attention(x, params, num_heads=H)
    jax.block_until_ready((attn, attn_weights))

    assert attn.shape == (T, B, E) and attn.dtype == jnp.complex64
    assert attn_weights.shape == (B, T, T) and attn_weights.dtype == jnp.complex64
    assert bool(jnp.isfinite(jnp.real(attn)).all())

    ref_attn, ref_w = _reference(x, params, num_heads=H)
    assert bool(jnp.allclose(attn, ref_attn, atol=2e-3, rtol=2e-3))
    assert bool(jnp.allclose(attn_weights, ref_w, atol=2e-3, rtol=2e-3))

    print("KERNEL_OK")
</pallas_src>

<mosaic_0001>
module attributes {stable_mosaic.version = 11 : i64} {
  func.func @_cplx_linear_kernel(%arg0: i32, %arg1: i32, %arg2: i32, %arg3: memref<16x32xf32, #tpu.memory_space<vmem>>, %arg4: memref<16x32xf32, #tpu.memory_space<vmem>>, %arg5: memref<32x96xf32, #tpu.memory_space<vmem>>, %arg6: memref<32x96xf32, #tpu.memory_space<vmem>>, %arg7: memref<1x96xf32, #tpu.memory_space<vmem>>, %arg8: memref<1x96xf32, #tpu.memory_space<vmem>>, %arg9: memref<16x96xf32, #tpu.memory_space<vmem>>, %arg10: memref<16x96xf32, #tpu.memory_space<vmem>>, %arg11: memref<16x96xf32, #tpu.memory_space<vmem>>, %arg12: memref<16x96xf32, #tpu.memory_space<vmem>>) attributes {dimension_semantics = [#tpu.dimension_semantics<parallel>, #tpu.dimension_semantics<parallel>, #tpu.dimension_semantics<arbitrary>], iteration_bounds = array<i64: 1, 1, 1>, scalar_prefetch = 0 : i64, scratch_operands = 2 : i64, tpu.core_type = #tpu.core_type<tc>, window_params = [{transform_indices = @transform_0, window_bounds = array<i64: 16, 32>}, {transform_indices = @transform_1, window_bounds = array<i64: 16, 32>}, {transform_indices = @transform_2, window_bounds = array<i64: 32, 96>}, {transform_indices = @transform_3, window_bounds = array<i64: 32, 96>}, {transform_indices = @transform_4, window_bounds = array<i64: 1, 96>}, {transform_indices = @transform_5, window_bounds = array<i64: 1, 96>}, {transform_indices = @transform_6, window_bounds = array<i64: 16, 96>}, {transform_indices = @transform_7, window_bounds = array<i64: 16, 96>}]} {
    %c0_i32 = arith.constant 0 : i32
    %0 = arith.cmpi eq, %arg2, %c0_i32 : i32
    %1 = arith.extui %0 : i1 to i32
    %c0_i32_0 = arith.constant 0 : i32
    %2 = arith.cmpi ne, %1, %c0_i32_0 : i32
    scf.if %2 {
      %cst_20 = arith.constant 0.000000e+00 : f32
      %24 = vector.broadcast %cst_20 : f32 to vector<16x96xf32>
      %c0_21 = arith.constant 0 : index
      %c0_22 = arith.constant 0 : index
      %25 = vector.load %arg11[%c0_21, %c0_22] : memref<16x96xf32, #tpu.memory_space<vmem>>, vector<16x96xf32>
      tpu.vector_store %arg11[%c0_21, %c0_22], %24 {strides = array<i32>} : memref<16x96xf32, #tpu.memory_space<vmem>>, vector<16x96xf32>,
      %cst_23 = arith.constant 0.000000e+00 : f32
      %26 = vector.broadcast %cst_23 : f32 to vector<16x96xf32>
      %c0_24 = arith.constant 0 : index
      %c0_25 = arith.constant 0 : index
      %27 = vector.load %arg12[%c0_24, %c0_25] : memref<16x96xf32, #tpu.memory_space<vmem>>, vector<16x96xf32>
      tpu.vector_store %arg12[%c0_24, %c0_25], %26 {strides = array<i32>} : memref<16x96xf32, #tpu.memory_space<vmem>>, vector<16x96xf32>,
    } else {
    }
    %c0 = arith.constant 0 : index
    %c0_1 = arith.constant 0 : index
    %3 = vector.load %arg3[%c0, %c0_1] : memref<16x32xf32, #tpu.memory_space<vmem>>, vector<16x32xf32>
    %c0_2 = arith.constant 0 : index
    %c0_3 = arith.constant 0 : index
    %4 = vector.load %arg4[%c0_2, %c0_3] : memref<16x32xf32, #tpu.memory_space<vmem>>, vector<16x32xf32>
    %c0_4 = arith.constant 0 : index
    %c0_5 = arith.constant 0 : index
    %5 = vector.load %arg5[%c0_4, %c0_5] : memref<32x96xf32, #tpu.memory_space<vmem>>, vector<32x96xf32>
    %c0_6 = arith.constant 0 : index
    %c0_7 = arith.constant 0 : index
    %6 = vector.load %arg6[%c0_6, %c0_7] : memref<32x96xf32, #tpu.memory_space<vmem>>, vector<32x96xf32>
    %cst = arith.constant dense<0.000000e+00> : vector<16x96xf32>
    %7 = tpu.matmul %3, %5, %cst {dimension_numbers = #tpu.dot_dimension_numbers<[1], [0], [0], [1], [0, 0, 1, 1], [], []>, precision = #tpu.contract_precision<fp32>} : vector<16x32xf32>, vector<32x96xf32>, vector<16x96xf32> -> vector<16x96xf32>
    %cst_8 = arith.constant dense<0.000000e+00> : vector<16x96xf32>
    %8 = tpu.matmul %4, %6, %cst_8 {dimension_numbers = #tpu.dot_dimension_numbers<[1], [0], [0], [1], [0, 0, 1, 1], [], []>, precision = #tpu.contract_precision<fp32>} : vector<16x32xf32>, vector<32x96xf32>, vector<16x96xf32> -> vector<16x96xf32>
    %9 = arith.addf %3, %4 : vector<16x32xf32>
    %10 = arith.addf %5, %6 : vector<32x96xf32>
    %cst_9 = arith.constant dense<0.000000e+00> : vector<16x96xf32>
    %11 = tpu.matmul %9, %10, %cst_9 {dimension_numbers = #tpu.dot_dimension_numbers<[1], [0], [0], [1], [0, 0, 1, 1], [], []>, precision = #tpu.contract_precision<fp32>} : vector<16x32xf32>, vector<32x96xf32>, vector<16x96xf32> -> vector<16x96xf32>
    %c0_10 = arith.constant 0 : index
    %c0_11 = arith.constant 0 : index
    %12 = vector.load %arg11[%c0_10, %c0_11] : memref<16x96xf32, #tpu.memory_space<vmem>>, vector<16x96xf32>
    %13 = arith.subf %7, %8 : vector<16x96xf32>
    %14 = arith.addf %12, %13 : vector<16x96xf32>
    %c0_12 = arith.constant 0 : index
    %c0_13 = arith.constant 0 : index
    %15 = vector.load %arg11[%c0_12, %c0_13] : memref<16x96xf32, #tpu.memory_space<vmem>>, vector<16x96xf32>
    tpu.vector_store %arg11[%c0_12, %c0_13], %14 {strides = array<i32>} : memref<16x96xf32, #tpu.memory_space<vmem>>, vector<16x96xf32>,
    %c0_14 = arith.constant 0 : index
    %c0_15 = arith.constant 0 : index
    %16 = vector.load %arg12[%c0_14, %c0_15] : memref<16x96xf32, #tpu.memory_space<vmem>>, vector<16x96xf32>
    %17 = arith.subf %11, %7 : vector<16x96xf32>
    %18 = arith.subf %17, %8 : vector<16x96xf32>
    %19 = arith.addf %16, %18 : vector<16x96xf32>
    %c0_16 = arith.constant 0 : index
    %c0_17 = arith.constant 0 : index
    %20 = vector.load %arg12[%c0_16, %c0_17] : memref<16x96xf32, #tpu.memory_space<vmem>>, vector<16x96xf32>
    tpu.vector_store %arg12[%c0_16, %c0_17], %19 {strides = array<i32>} : memref<16x96xf32, #tpu.memory_space<vmem>>, vector<16x96xf32>,
    %c0_i32_18 = arith.constant 0 : i32
    %21 = arith.cmpi eq, %arg2, %c0_i32_18 : i32
    %22 = arith.extui %21 : i1 to i32
    %c0_i32_19 = arith.constant 0 : i32
    %23 = arith.cmpi ne, %22, %c0_i32_19 : i32
    scf.if %23 {
      %c0_20 = arith.constant 0 : index
      %c0_21 = arith.constant 0 : index
      %24 = vector.load %arg11[%c0_20, %c0_21] : memref<16x96xf32, #tpu.memory_space<vmem>>, vector<16x96xf32>
      %c0_22 = arith.constant 0 : index
      %c0_23 = arith.constant 0 : index
      %25 = vector.load %arg7[%c0_22, %c0_23] : memref<1x96xf32, #tpu.memory_space<vmem>>, vector<1x96xf32>
      %26 = vector.broadcast %25 : vector<1x96xf32> to vector<16x96xf32>
      %27 = arith.addf %24, %26 : vector<16x96xf32>
      %c0_24 = arith.constant 0 : index
      %c0_25 = arith.constant 0 : index
      %28 = vector.load %arg9[%c0_24, %c0_25] : memref<16x96xf32, #tpu.memory_space<vmem>>, vector<16x96xf32>
      tpu.vector_store %arg9[%c0_24, %c0_25], %27 {strides = array<i32>} : memref<16x96xf32, #tpu.memory_space<vmem>>, vector<16x96xf32>,
      %c0_26 = arith.constant 0 : index
      %c0_27 = arith.constant 0 : index
      %29 = vector.load %arg12[%c0_26, %c0_27] : memref<16x96xf32, #tpu.memory_space<vmem>>, vector<16x96xf32>
      %c0_28 = arith.constant 0 : index
      %c0_29 = arith.constant 0 : index
      %30 = vector.load %arg8[%c0_28, %c0_29] : memref<1x96xf32, #tpu.memory_space<vmem>>, vector<1x96xf32>
      %31 = vector.broadcast %30 : vector<1x96xf32> to vector<16x96xf32>
      %32 = arith.addf %29, %31 : vector<16x96xf32>
      %c0_30 = arith.constant 0 : index
      %c0_31 = arith.constant 0 : index
      %33 = vector.load %arg10[%c0_30, %c0_31] : memref<16x96xf32, #tpu.memory_space<vmem>>, vector<16x96xf32>
      tpu.vector_store %arg10[%c0_30, %c0_31], %32 {strides = array<i32>} : memref<16x96xf32, #tpu.memory_space<vmem>>, vector<16x96xf32>,
    } else {
    }
    return
  }
  func.func @transform_0(%arg0: i32, %arg1: i32, %arg2: i32) -> (i32, i32) {
    %c0_i32 = arith.constant 0 : i32
    return %arg0, %arg2 : i32, i32
  }
  func.func @transform_1(%arg0: i32, %arg1: i32, %arg2: i32) -> (i32, i32) {
    %c0_i32 = arith.constant 0 : i32
    return %arg0, %arg2 : i32, i32
  }
  func.func @transform_2(%arg0: i32, %arg1: i32, %arg2: i32) -> (i32, i32) {
    %c0_i32 = arith.constant 0 : i32
    return %arg2, %arg1 : i32, i32
  }
  func.func @transform_3(%arg0: i32, %arg1: i32, %arg2: i32) -> (i32, i32) {
    %c0_i32 = arith.constant 0 : i32
    return %arg2, %arg1 : i32, i32
  }
  func.func @transform_4(%arg0: i32, %arg1: i32, %arg2: i32) -> (i32, i32) {
    %c0_i32 = arith.constant 0 : i32
    %c0_i32_0 = arith.constant 0 : i32
    return %c0_i32, %arg1 : i32, i32
  }
  func.func @transform_5(%arg0: i32, %arg1: i32, %arg2: i32) -> (i32, i32) {
    %c0_i32 = arith.constant 0 : i32
    %c0_i32_0 = arith.constant 0 : i32
    return %c0_i32, %arg1 : i32, i32
  }
  func.func @transform_6(%arg0: i32, %arg1: i32, %arg2: i32) -> (i32, i32) {
    %c0_i32 = arith.constant 0 : i32
    return %arg0, %arg1 : i32, i32
  }
  func.func @transform_7(%arg0: i32, %arg1: i32, %arg2: i32) -> (i32, i32) {
    %c0_i32 = arith.constant 0 : i32
    return %arg0, %arg1 : i32, i32
  }
}

</mosaic_0001>

<llo_original>
// kernel: tpu_custom_call.1
$region0: #{tpu_custom_call.1}
  #allocation0 [shape = 'u32[]', space=smem, size = 0x4, offset = 0x4, fixed_abs, tag = 'smem constant byte address 0x4 - core index']
  #allocation1 [shape = 'u32[72,128]{1,0:T(1,128)}', space=vmem, size = 0x9000, scoped, tag = 'internal scratch']
  #allocation2 [shape = 'f32[16,96]{1,0:T(8,128)}', space=vmem, size = 0x2000, scoped, tag = 'scratch operand']
  #allocation3 [shape = 'f32[16,96]{1,0:T(8,128)}', space=vmem, size = 0x2000, scoped, tag = 'scratch operand']
  %s0 = inlined_call_operand.hbm [shape: f32[16,32], index: 0, kind: input, shape index: {}]
  %s1 = inlined_call_operand.hbm [shape: f32[16,32], index: 1, kind: input, shape index: {}]
  %s2 = inlined_call_operand.hbm [shape: f32[32,96], index: 2, kind: input, shape index: {}]
  %s3 = inlined_call_operand.hbm [shape: f32[32,96], index: 3, kind: input, shape index: {}]
  %s4 = inlined_call_operand.vmem [shape: f32[1,96], index: 4, kind: input, shape index: {}]
  %s5 = inlined_call_operand.vmem [shape: f32[1,96], index: 5, kind: input, shape index: {}]
  %s6 = inlined_call_operand.hbm [shape: f32[16,96], index: 6, kind: output, shape index: {0}]
  %s7 = inlined_call_operand.hbm [shape: f32[16,96], index: 7, kind: output, shape index: {1}]
  %8 = xla_tuple %s6, %s7
  %s9 = sld [smem:[#allocation0]]
  $region66: #{tpu_custom_call.1} parent=0
    _
  %s11 = ssub.s32 1, %s9
  %s12 = scalar_select 0, %s11, %s9
  $region1: #{tpu_custom_call.1} parent=0
    #allocation4 [shape = 'u8[8192]{0}', space=vmem, size = 0x2000, scoped, tag = 'input window, operand 0, single buffered']
    #allocation5 [shape = 's32[1]{0}', space=sflag, size = 0x4, scoped, tag = 'scoped memory for tpu_custom_call.1']
    #allocation6 [shape = 's32[1]{0}', space=sflag, size = 0x4, scoped, tag = 'scoped memory for tpu_custom_call.1']
    #allocation7 [shape = 'u8[8192]{0}', space=vmem, size = 0x2000, scoped, tag = 'input window, operand 1, single buffered']
    #allocation8 [shape = 's32[1]{0}', space=sflag, size = 0x4, scoped, tag = 'scoped memory for tpu_custom_call.1']
    #allocation9 [shape = 'u8[16384]{0}', space=vmem, size = 0x4000, scoped, tag = 'input window, operand 2, single buffered']
    #allocation10 [shape = 'u8[16384]{0}', space=vmem, size = 0x4000, scoped, tag = 'input window, operand 3, single buffered']
    #allocation11 [shape = 's32[1]{0}', space=sflag, size = 0x4, scoped, tag = 'scoped memory for tpu_custom_call.1']
    #allocation12 [shape = 'u8[8192]{0}', space=vmem, size = 0x2000, scoped, tag = 'output window, operand 0, single buffered']
    #allocation13 [shape = 'u8[8192]{0}', space=vmem, size = 0x2000, scoped, tag = 'output window, operand 1, single buffered']
    #allocation14 [shape = 's32[1]{0}', space=sflag, size = 0x4, scoped, tag = 'scoped memory for tpu_custom_call.1']
    %13 = vsyncpa [#allocation5], 0
    %14 = vsyncpa [#allocation8], 0
    %15 = vsyncpa [#allocation11], 0
    %16 = vsyncpa [#allocation6], 0
    %17 = vsyncpa [#allocation14], 0
    // Predicated region
    $region2: #{tpu_custom_call.1} parent=1 // pred_check
      _
    $region3: #{tpu_custom_call.1} parent=1 // pred_check_branch
      %19 = sbr.rel (0) target = $region5
    $region4: #{tpu_custom_call.1} parent=1 // pred_region
      %21 = vsyncadd [#allocation5], 0
      %s22 = sshll.u32 %s0, 4
      %s23 = int_to_ptr.hbm [resolvable:$true] %s22
      %s24 = sshll.u32 [#allocation4], 4
      %s25 = int_to_ptr.vmem [resolvable:$true] %s24
      %30 = dma.hbm_to_vmem [thread:$0]  %s23, 256, %s25, [#allocation5], 128, 128, 8
    $region5: #{tpu_custom_call.1} parent=1 // pred_fallthru
      _
    // Predicated region
    $region6: #{tpu_custom_call.1} parent=1 // pred_check
      _
    $region7: #{tpu_custom_call.1} parent=1 // pred_check_branch
      %32 = sbr.rel (0) target = $region9
    $region8: #{tpu_custom_call.1} parent=1 // pred_region
      %34 = vsyncadd [#allocation8], 0
      %s35 = sshll.u32 %s1, 4
      %s36 = int_to_ptr.hbm [resolvable:$true] %s35
      %s37 = sshll.u32 [#allocation7], 4
      %s38 = int_to_ptr.vmem [resolvable:$true] %s37
      %43 = dma.hbm_to_vmem [thread:$0]  %s36, 256, %s38, [#allocation8], 128, 128, 8
    $region9: #{tpu_custom_call.1} parent=1 // pred_fallthru
      _
    // Predicated region
    $region10: #{tpu_custom_call.1} parent=1 // pred_check
      _
    $region11: #{tpu_custom_call.1} parent=1 // pred_check_branch
      %45 = sbr.rel (0) target = $region13
    $region12: #{tpu_custom_call.1} parent=1 // pred_region
      %47 = vsyncadd [#allocation8], 0
      %s48 = sshll.u32 %s2, 4
      %s49 = int_to_ptr.hbm [resolvable:$true] %s48
      %s50 = sshll.u32 [#allocation9], 4
      %s51 = int_to_ptr.vmem [resolvable:$true] %s50
      %56 = dma.hbm_to_vmem [thread:$0]  %s49, 512, %s51, [#allocation8], 128, 128, 8
    $region13: #{tpu_custom_call.1} parent=1 // pred_fallthru
      _
    // Predicated region
    $region14: #{tpu_custom_call.1} parent=1 // pred_check
      _
    $region15: #{tpu_custom_call.1} parent=1 // pred_check_branch
      %58 = sbr.rel (0) target = $region17
    $region16: #{tpu_custom_call.1} parent=1 // pred_region
      %60 = vsyncadd [#allocation11], 0
      %s61 = sshll.u32 %s3, 4
      %s62 = int_to_ptr.hbm [resolvable:$true] %s61
      %s63 = sshll.u32 [#allocation10], 4
      %s64 = int_to_ptr.vmem [resolvable:$true] %s63
      %69 = dma.hbm_to_vmem [thread:$0]  %s62, 512, %s64, [#allocation11], 128, 128, 8
    $region17: #{tpu_custom_call.1} parent=1 // pred_fallthru
      _
    // Predicated region
    $region18: #{tpu_custom_call.1} parent=1 // pred_check
      _
    $region19: #{tpu_custom_call.1} parent=1 // pred_check_branch
      %71 = sbr.rel (0) target = $region21
    $region20: #{tpu_custom_call.1} parent=1 // pred_region
      _
    $region21: #{tpu_custom_call.1} parent=1 // pred_fallthru
      _
    // Predicated region
    $region22: #{tpu_custom_call.1} parent=1 // pred_check
      _
    $region23: #{tpu_custom_call.1} parent=1 // pred_check_branch
      %73 = sbr.rel (0) target = $region25
    $region24: #{tpu_custom_call.1} parent=1 // pred_region
      _
    $region25: #{tpu_custom_call.1} parent=1 // pred_fallthru
      _
    // Predicated region
    $region26: #{tpu_custom_call.1} parent=1 // pred_check
      _
    $region27: #{tpu_custom_call.1} parent=1 // pred_check_branch
      %75 = sbr.rel (0) target = $region29
    $region28: #{tpu_custom_call.1} parent=1 // pred_region
      %77 = dma.done [#allocation5], 256
    $region29: #{tpu_custom_call.1} parent=1 // pred_fallthru
      _
    // Predicated region
    $region30: #{tpu_custom_call.1} parent=1 // pred_check
      _
    $region31: #{tpu_custom_call.1} parent=1 // pred_check_branch
      %79 = sbr.rel (0) target = $region33
    $region32: #{tpu_custom_call.1} parent=1 // pred_region
      %81 = dma.done [#allocation8], 256
    $region33: #{tpu_custom_call.1} parent=1 // pred_fallthru
      _
    // Predicated region
    $region34: #{tpu_custom_call.1} parent=1 // pred_check
      _
    $region35: #{tpu_custom_call.1} parent=1 // pred_check_branch
      %83 = sbr.rel (0) target = $region37
    $region36: #{tpu_custom_call.1} parent=1 // pred_region
      %85 = dma.done [#allocation8], 512
    $region37: #{tpu_custom_call.1} parent=1 // pred_fallthru
      _
    // Predicated region
    $region38: #{tpu_custom_call.1} parent=1 // pred_check
      _
    $region39: #{tpu_custom_call.1} parent=1 // pred_check_branch
      %87 = sbr.rel (0) target = $region41
    $region40: #{tpu_custom_call.1} parent=1 // pred_region
      %89 = dma.done [#allocation11], 512
    $region41: #{tpu_custom_call.1} parent=1 // pred_fallthru
      _
    %p90 = scmp.eq.s32.totalorder 0, 0
    // Predicated region
    $region42: #{tpu_custom_call.1} parent=1 // pred_check
      %p91 = pneg %p90
    $region43: #{tpu_custom_call.1} parent=1 // pred_check_branch
      %93 = sbr.rel (%p91) target = $region45
    $region44: #{tpu_custom_call.1} parent=1 // pred_region
      %vm94 = vcmask 785408
      %95 = vst.msk [vmem:[#allocation2] sm:$0xff] %vm94, 0.0
      %96 = vst.msk [vmem:[#allocation2 + $0x8] sm:$0xff] %vm94, 0.0
      %97 = vst.msk [vmem:[#allocation3] sm:$0xff] %vm94, 0.0
      %98 = vst.msk [vmem:[#allocation3 + $0x8] sm:$0xff] %vm94, 0.0
    $region45: #{tpu_custom_call.1} parent=1 // pred_fallthru
      _
    %v99 = vld [vmem:[#allocation4] sm:$0xff]
    %v100 = vld [vmem:[#allocation4 + $0x8] sm:$0xff]
    %v101 = vld [vmem:[#allocation7] sm:$0xff]
    %v102 = vld [vmem:[#allocation7 + $0x8] sm:$0xff]
    %v103 = vld [vmem:[#allocation9] sm:$0xff]
    %v104 = vld [vmem:[#allocation9 + $0x8] sm:$0xff]
    %v105 = vld [vmem:[#allocation9 + $0x10] sm:$0xff]
    %v106 = vld [vmem:[#allocation9 + $0x18] sm:$0xff]
    %v107 = vld [vmem:[#allocation10] sm:$0xff]
    %v108 = vld [vmem:[#allocation10 + $0x8] sm:$0xff]
    %v109 = vld [vmem:[#allocation10 + $0x10] sm:$0xff]
    %v110 = vld [vmem:[#allocation10 + $0x18] sm:$0xff]
    %vm111 = vcmask 261120
    %v113 = vsel %vm111, %v99, 0
    %v116 = vsel %vm111, %v100, 0
    %118 = vmatpush.msra.mxu0 0.0
    %119 = vmatpush.msra.mxu0 0.0
    %120 = vmatpush.msra.mxu0 0.0
    %121 = vmatpush.msra.mxu0 0.0
    %122 = vmatpush.msra.mxu0 0.0
    %123 = vmatpush.msra.mxu0 0.0
    %124 = vmatpush.msra.mxu0 0.0
    %125 = vmatpush.msra.mxu0 0.0
    %126 = vmatpush.msra.mxu0 0.0
    %127 = vmatpush.msra.mxu0 0.0
    %128 = vmatpush.msra.mxu0 0.0
    %129 = vmatpush.msra.mxu0 0.0
    %v130 = vand.u32 %v106, 4294901760
    %131 = vmatpush.msra.mxu0 %v130
    %v132 = vand.u32 %v105, 4294901760
    %133 = vmatpush.msra.mxu0 %v132
    %v134 = vand.u32 %v104, 4294901760
    %135 = vmatpush.msra.mxu0 %v134
    %v136 = vand.u32 %v103, 4294901760
    %137 = vmatpush.msra.mxu0 %v136
    %v138 = vand.u32 %v113, 4294901760
    %v139 = vsub.f32 %v113, %v138
    %v140 = vand.u32 %v139, 4294901760
    %v141 = vsub.f32 %v139, %v140
    %v142 = vand.u32 %v141, 4294901760
    %143 = vmatmul.f32.gmra.mxu0 %v142
    %v144 = vpop.f32.mrf.mxu0
    %v145 = vadd.f32 0.0, %v144
    %v146 = vand.u32 %v116, 4294901760
    %v147 = vsub.f32 %v116, %v146
    %v148 = vand.u32 %v147, 4294901760
    %v149 = vsub.f32 %v147, %v148
    %v150 = vand.u32 %v149, 4294901760
    %151 = vmatmul.f32.gmra.mxu0 %v150
    %v152 = vpop.f32.mrf.mxu0
    %v153 = vadd.f32 0.0, %v152
    %154 = vdwg.mxu0
    %155 = vmatpush.msra.mxu0 0.0
    %156 = vmatpush.msra.mxu0 0.0
    %157 = vmatpush.msra.mxu0 0.0
    %158 = vmatpush.msra.mxu0 0.0
    %159 = vmatpush.msra.mxu0 0.0
    %160 = vmatpush.msra.mxu0 0.0
    %161 = vmatpush.msra.mxu0 0.0
    %162 = vmatpush.msra.mxu0 0.0
    %163 = vmatpush.msra.mxu0 0.0
    %164 = vmatpush.msra.mxu0 0.0
    %165 = vmatpush.msra.mxu0 0.0
    %166 = vmatpush.msra.mxu0 0.0
    %v167 = vand.u32 %v106, 4294901760
    %v168 = vsub.f32 %v106, %v167
    %v169 = vand.u32 %v168, 4294901760
    %v170 = vsub.f32 %v168, %v169
    %v171 = vand.u32 %v170, 4294901760
    %172 = vmatpush.msra.mxu0 %v171
    %v173 = vand.u32 %v105, 4294901760
    %v174 = vsub.f32 %v105, %v173
    %v175 = vand.u32 %v174, 4294901760
    %v176 = vsub.f32 %v174, %v175
    %v177 = vand.u32 %v176, 4294901760
    %178 = vmatpush.msra.mxu0 %v177
    %v179 = vand.u32 %v104, 4294901760
    %v180 = vsub.f32 %v104, %v179
    %v181 = vand.u32 %v180, 4294901760
    %v182 = vsub.f32 %v180, %v181
    %v183 = vand.u32 %v182, 4294901760
    %184 = vmatpush.msra.mxu0 %v183
    %v185 = vand.u32 %v103, 4294901760
    %v186 = vsub.f32 %v103, %v185
    %v187 = vand.u32 %v186, 4294901760
    %v188 = vsub.f32 %v186, %v187
    %v189 = vand.u32 %v188, 4294901760
    %190 = vmatpush.msra.mxu0 %v189
    %v191 = vand.u32 %v113, 4294901760
    %192 = vmatmul.f32.gmra.mxu0 %v191
    %v193 = vpop.f32.mrf.mxu0
    %v194 = vadd.f32 %v145, %v193
    %v195 = vand.u32 %v116, 4294901760
    %196 = vmatmul.f32.gmra.mxu0 %v195
    %v197 = vpop.f32.mrf.mxu0
    %v198 = vadd.f32 %v153, %v197
    %199 = vdwg.mxu0
    %200 = vmatpush.msra.mxu0 0.0
    %201 = vmatpush.msra.mxu0 0.0
    %202 = vmatpush.msra.mxu0 0.0
    %203 = vmatpush.msra.mxu0 0.0
    %204 = vmatpush.msra.mxu0 0.0
    %205 = vmatpush.msra.mxu0 0.0
    %206 = vmatpush.msra.mxu0 0.0
    %207 = vmatpush.msra.mxu0 0.0
    %208 = vmatpush.msra.mxu0 0.0
    %209 = vmatpush.msra.mxu0 0.0
    %210 = vmatpush.msra.mxu0 0.0
    %211 = vmatpush.msra.mxu0 0.0
    %v212 = vand.u32 %v106, 4294901760
    %v213 = vsub.f32 %v106, %v212
    %214 = vmatpush.msra.mxu0 %v213
    %v215 = vand.u32 %v105, 4294901760
    %v216 = vsub.f32 %v105, %v215
    %217 = vmatpush.msra.mxu0 %v216
    %v218 = vand.u32 %v104, 4294901760
    %v219 = vsub.f32 %v104, %v218
    %220 = vmatpush.msra.mxu0 %v219
    %v221 = vand.u32 %v103, 4294901760
    %v222 = vsub.f32 %v103, %v221
    %223 = vmatpush.msra.mxu0 %v222
    %v224 = vand.u32 %v113, 4294901760
    %v225 = vsub.f32 %v113, %v224
    %226 = vmatmul.f32.gmra.mxu0 %v225
    %v227 = vpop.f32.mrf.mxu0
    %v228 = vadd.f32 %v194, %v227
    %v229 = vand.u32 %v116, 4294901760
    %v230 = vsub.f32 %v116, %v229
    %231 = vmatmul.f32.gmra.mxu0 %v230
    %v232 = vpop.f32.mrf.mxu0
    %v233 = vadd.f32 %v198, %v232
    %234 = vdwg.mxu0
    %235 = vmatpush.msra.mxu0 0.0
    %236 = vmatpush.msra.mxu0 0.0
    %237 = vmatpush.msra.mxu0 0.0
    %238 = vmatpush.msra.mxu0 0.0
    %239 = vmatpush.msra.mxu0 0.0
    %240 = vmatpush.msra.mxu0 0.0
    %241 = vmatpush.msra.mxu0 0.0
    %242 = vmatpush.msra.mxu0 0.0
    %243 = vmatpush.msra.mxu0 0.0
    %244 = vmatpush.msra.mxu0 0.0
    %245 = vmatpush.msra.mxu0 0.0
    %246 = vmatpush.msra.mxu0 0.0
    %v247 = vand.u32 %v106, 4294901760
    %248 = vmatpush.msra.mxu0 %v247
    %v249 = vand.u32 %v105, 4294901760
    %250 = vmatpush.msra.mxu0 %v249
    %v251 = vand.u32 %v104, 4294901760
    %252 = vmatpush.msra.mxu0 %v251
    %v253 = vand.u32 %v103, 4294901760
    %254 = vmatpush.msra.mxu0 %v253
    %v255 = vand.u32 %v113, 4294901760
    %v256 = vsub.f32 %v113, %v255
    %v257 = vand.u32 %v256, 4294901760
    %258 = vmatmul.f32.gmra.mxu0 %v257
    %v259 = vpop.f32.mrf.mxu0
    %v260 = vadd.f32 %v228, %v259
    %v261 = vand.u32 %v116, 4294901760
    %v262 = vsub.f32 %v116, %v261
    %v263 = vand.u32 %v262, 4294901760
    %264 = vmatmul.f32.gmra.mxu0 %v263
    %v265 = vpop.f32.mrf.mxu0
    %v266 = vadd.f32 %v233, %v265
    %267 = vdwg.mxu0
    %268 = vmatpush.msra.mxu0 0.0
    %269 = vmatpush.msra.mxu0 0.0
    %270 = vmatpush.msra.mxu0 0.0
    %271 = vmatpush.msra.mxu0 0.0
    %272 = vmatpush.msra.mxu0 0.0
    %273 = vmatpush.msra.mxu0 0.0
    %274 = vmatpush.msra.mxu0 0.0
    %275 = vmatpush.msra.mxu0 0.0
    %276 = vmatpush.msra.mxu0 0.0
    %277 = vmatpush.msra.mxu0 0.0
    %278 = vmatpush.msra.mxu0 0.0
    %279 = vmatpush.msra.mxu0 0.0
    %v280 = vand.u32 %v106, 4294901760
    %v281 = vsub.f32 %v106, %v280
    %v282 = vand.u32 %v281, 4294901760
    %283 = vmatpush.msra.mxu0 %v282
    %v284 = vand.u32 %v105, 4294901760
    %v285 = vsub.f32 %v105, %v284
    %v286 = vand.u32 %v285, 4294901760
    %287 = vmatpush.msra.mxu0 %v286
    %v288 = vand.u32 %v104, 4294901760
    %v289 = vsub.f32 %v104, %v288
    %v290 = vand.u32 %v289, 4294901760
    %291 = vmatpush.msra.mxu0 %v290
    %v292 = vand.u32 %v103, 4294901760
    %v293 = vsub.f32 %v103, %v292
    %v294 = vand.u32 %v293, 4294901760
    %295 = vmatpush.msra.mxu0 %v294
    %v296 = vand.u32 %v113, 4294901760
    %297 = vmatmul.f32.gmra.mxu0 %v296
    %v298 = vpop.f32.mrf.mxu0
    %v299 = vadd.f32 %v260, %v298
    %v300 = vand.u32 %v116, 4294901760
    %301 = vmatmul.f32.gmra.mxu0 %v300
    %v302 = vpop.f32.mrf.mxu0
    %v303 = vadd.f32 %v266, %v302
    %304 = vdwg.mxu0
    %305 = vmatpush.msra.mxu0 0.0
    %306 = vmatpush.msra.mxu0 0.0
    %307 = vmatpush.msra.mxu0 0.0
    %308 = vmatpush.msra.mxu0 0.0
    %309 = vmatpush.msra.mxu0 0.0
    %310 = vmatpush.msra.mxu0 0.0
    %311 = vmatpush.msra.mxu0 0.0
    %312 = vmatpush.msra.mxu0 0.0
    %313 = vmatpush.msra.mxu0 0.0
    %314 = vmatpush.msra.mxu0 0.0
    %315 = vmatpush.msra.mxu0 0.0
    %316 = vmatpush.msra.mxu0 0.0
    %v317 = vand.u32 %v106, 4294901760
    %318 = vmatpush.msra.mxu0 %v317
    %v319 = vand.u32 %v105, 4294901760
    %320 = vmatpush.msra.mxu0 %v319
    %v321 = vand.u32 %v104, 4294901760
    %322 = vmatpush.msra.mxu0 %v321
    %v323 = vand.u32 %v103, 4294901760
    %324 = vmatpush.msra.mxu0 %v323
    %v325 = vand.u32 %v113, 4294901760
    %326 = vmatmul.f32.gmra.mxu0 %v325
    %v327 = vpop.f32.mrf.mxu0
    %v328 = vadd.f32 %v299, %v327
    %v329 = vand.u32 %v116, 4294901760
    %330 = vmatmul.f32.gmra.mxu0 %v329
    %v331 = vpop.f32.mrf.mxu0
    %v332 = vadd.f32 %v303, %v331
    %333 = vdwg.mxu0
    %v335 = vsel %vm111, %v101, 0
    %v338 = vsel %vm111, %v102, 0
    %340 = vmatpush.msra.mxu0 0.0
    %341 = vmatpush.msra.mxu0 0.0
    %342 = vmatpush.msra.mxu0 0.0
    %343 = vmatpush.msra.mxu0 0.0
    %344 = vmatpush.msra.mxu0 0.0
    %345 = vmatpush.msra.mxu0 0.0
    %346 = vmatpush.msra.mxu0 0.0
    %347 = vmatpush.msra.mxu0 0.0
    %348 = vmatpush.msra.mxu0 0.0
    %349 = vmatpush.msra.mxu0 0.0
    %350 = vmatpush.msra.mxu0 0.0
    %351 = vmatpush.msra.mxu0 0.0
    %v352 = vand.u32 %v110, 4294901760
    %353 = vmatpush.msra.mxu0 %v352
    %v354 = vand.u32 %v109, 4294901760
    %355 = vmatpush.msra.mxu0 %v354
    %v356 = vand.u32 %v108, 4294901760
    %357 = vmatpush.msra.mxu0 %v356
    %v358 = vand.u32 %v107, 4294901760
    %359 = vmatpush.msra.mxu0 %v358
    %v360 = vand.u32 %v335, 4294901760
    %v361 = vsub.f32 %v335, %v360
    %v362 = vand.u32 %v361, 4294901760
    %v363 = vsub.f32 %v361, %v362
    %v364 = vand.u32 %v363, 4294901760
    %365 = vmatmul.f32.gmra.mxu0 %v364
    %v366 = vpop.f32.mrf.mxu0
    %v367 = vadd.f32 0.0, %v366
    %v368 = vand.u32 %v338, 4294901760
    %v369 = vsub.f32 %v338, %v368
    %v370 = vand.u32 %v369, 4294901760
    %v371 = vsub.f32 %v369, %v370
    %v372 = vand.u32 %v371, 4294901760
    %373 = vmatmul.f32.gmra.mxu0 %v372
    %v374 = vpop.f32.mrf.mxu0
    %v375 = vadd.f32 0.0, %v374
    %376 = vdwg.mxu0
    %377 = vmatpush.msra.mxu0 0.0
    %378 = vmatpush.msra.mxu0 0.0
    %379 = vmatpush.msra.mxu0 0.0
    %380 = vmatpush.msra.mxu0 0.0
    %381 = vmatpush.msra.mxu0 0.0
    %382 = vmatpush.msra.mxu0 0.0
    %383 = vmatpush.msra.mxu0 0.0
    %384 = vmatpush.msra.mxu0 0.0
    %385 = vmatpush.msra.mxu0 0.0
    %386 = vmatpush.msra.mxu0 0.0
    %387 = vmatpush.msra.mxu0 0.0
    %388 = vmatpush.msra.mxu0 0.0
    %v389 = vand.u32 %v110, 4294901760
    %v390 = vsub.f32 %v110, %v389
    %v391 = vand.u32 %v390, 4294901760
    %v392 = vsub.f32 %v390, %v391
    %v393 = vand.u32 %v392, 4294901760
    %394 = vmatpush.msra.mxu0 %v393
    %v395 = vand.u32 %v109, 4294901760
    %v396 = vsub.f32 %v109, %v395
    %v397 = vand.u32 %v396, 4294901760
    %v398 = vsub.f32 %v396, %v397
    %v399 = vand.u32 %v398, 4294901760
    %400 = vmatpush.msra.mxu0 %v399
    %v401 = vand.u32 %v108, 4294901760
    %v402 = vsub.f32 %v108, %v401
    %v403 = vand.u32 %v402, 4294901760
    %v404 = vsub.f32 %v402, %v403
    %v405 = vand.u32 %v404, 4294901760
    %406 = vmatpush.msra.mxu0 %v405
    %v407 = vand.u32 %v107, 4294901760
    %v408 = vsub.f32 %v107, %v407
    %v409 = vand.u32 %v408, 4294901760
    %v410 = vsub.f32 %v408, %v409
    %v411 = vand.u32 %v410, 4294901760
    %412 = vmatpush.msra.mxu0 %v411
    %v413 = vand.u32 %v335, 4294901760
    %414 = vmatmul.f32.gmra.mxu0 %v413
    %v415 = vpop.f32.mrf.mxu0
    %v416 = vadd.f32 %v367, %v415
    %v417 = vand.u32 %v338, 4294901760
    %418 = vmatmul.f32.gmra.mxu0 %v417
    %v419 = vpop.f32.mrf.mxu0
    %v420 = vadd.f32 %v375, %v419
    %421 = vdwg.mxu0
    %422 = vmatpush.msra.mxu0 0.0
    %423 = vmatpush.msra.mxu0 0.0
    %424 = vmatpush.msra.mxu0 0.0
    %425 = vmatpush.msra.mxu0 0.0
    %426 = vmatpush.msra.mxu0 0.0
    %427 = vmatpush.msra.mxu0 0.0
    %428 = vmatpush.msra.mxu0 0.0
    %429 = vmatpush.msra.mxu0 0.0
    %430 = vmatpush.msra.mxu0 0.0
    %431 = vmatpush.msra.mxu0 0.0
    %432 = vmatpush.msra.mxu0 0.0
    %433 = vmatpush.msra.mxu0 0.0
    %v434 = vand.u32 %v110, 4294901760
    %v435 = vsub.f32 %v110, %v434
    %436 = vmatpush.msra.mxu0 %v435
    %v437 = vand.u32 %v109, 4294901760
    %v438 = vsub.f32 %v109, %v437
    %439 = vmatpush.msra.mxu0 %v438
    %v440 = vand.u32 %v108, 4294901760
    %v441 = vsub.f32 %v108, %v440
    %442 = vmatpush.msra.mxu0 %v441
    %v443 = vand.u32 %v107, 4294901760
    %v444 = vsub.f32 %v107, %v443
    %445 = vmatpush.msra.mxu0 %v444
    %v446 = vand.u32 %v335, 4294901760
    %v447 = vsub.f32 %v335, %v446
    %448 = vmatmul.f32.gmra.mxu0 %v447
    %v449 = vpop.f32.mrf.mxu0
    %v450 = vadd.f32 %v416, %v449
    %v451 = vand.u32 %v338, 4294901760
    %v452 = vsub.f32 %v338, %v451
    %453 = vmatmul.f32.gmra.mxu0 %v452
    %v454 = vpop.f32.mrf.mxu0
    %v455 = vadd.f32 %v420, %v454
    %456 = vdwg.mxu0
    %457 = vmatpush.msra.mxu0 0.0
    %458 = vmatpush.msra.mxu0 0.0
    %459 = vmatpush.msra.mxu0 0.0
    %460 = vmatpush.msra.mxu0 0.0
    %461 = vmatpush.msra.mxu0 0.0
    %462 = vmatpush.msra.mxu0 0.0
    %463 = vmatpush.msra.mxu0 0.0
    %464 = vmatpush.msra.mxu0 0.0
    %465 = vmatpush.msra.mxu0 0.0
    %466 = vmatpush.msra.mxu0 0.0
    %467 = vmatpush.msra.mxu0 0.0
    %468 = vmatpush.msra.mxu0 0.0
    %v469 = vand.u32 %v110, 4294901760
    %470 = vmatpush.msra.mxu0 %v469
    %v471 = vand.u32 %v109, 4294901760
    %472 = vmatpush.msra.mxu0 %v471
    %v473 = vand.u32 %v108, 4294901760
    %474 = vmatpush.msra.mxu0 %v473
    %v475 = vand.u32 %v107, 4294901760
    %476 = vmatpush.msra.mxu0 %v475
    %v477 = vand.u32 %v335, 4294901760
    %v478 = vsub.f32 %v335, %v477
    %v479 = vand.u32 %v478, 4294901760
    %480 = vmatmul.f32.gmra.mxu0 %v479
    %v481 = vpop.f32.mrf.mxu0
    %v482 = vadd.f32 %v450, %v481
    %v483 = vand.u32 %v338, 4294901760
    %v484 = vsub.f32 %v338, %v483
    %v485 = vand.u32 %v484, 4294901760
    %486 = vmatmul.f32.gmra.mxu0 %v485
    %v487 = vpop.f32.mrf.mxu0
    %v488 = vadd.f32 %v455, %v487
    %489 = vdwg.mxu0
    %490 = vmatpush.msra.mxu0 0.0
    %491 = vmatpush.msra.mxu0 0.0
    %492 = vmatpush.msra.mxu0 0.0
    %493 = vmatpush.msra.mxu0 0.0
    %494 = vmatpush.msra.mxu0 0.0
    %495 = vmatpush.msra.mxu0 0.0
    %496 = vmatpush.msra.mxu0 0.0
    %497 = vmatpush.msra.mxu0 0.0
    %498 = vmatpush.msra.mxu0 0.0
    %499 = vmatpush.msra.mxu0 0.0
    %500 = vmatpush.msra.mxu0 0.0
    %501 = vmatpush.msra.mxu0 0.0
    %v502 = vand.u32 %v110, 4294901760
    %v503 = vsub.f32 %v110, %v502
    %v504 = vand.u32 %v503, 4294901760
    %505 = vmatpush.msra.mxu0 %v504
    %v506 = vand.u32 %v109, 4294901760
    %v507 = vsub.f32 %v109, %v506
    %v508 = vand.u32 %v507, 4294901760
    %509 = vmatpush.msra.mxu0 %v508
    %v510 = vand.u32 %v108, 4294901760
    %v511 = vsub.f32 %v108, %v510
    %v512 = vand.u32 %v511, 4294901760
    %513 = vmatpush.msra.mxu0 %v512
    %v514 = vand.u32 %v107, 4294901760
    %v515 = vsub.f32 %v107, %v514
    %v516 = vand.u32 %v515, 4294901760
    %517 = vmatpush.msra.mxu0 %v516
    %v518 = vand.u32 %v335, 4294901760
    %519 = vmatmul.f32.gmra.mxu0 %v518
    %v520 = vpop.f32.mrf.mxu0
    %v521 = vadd.f32 %v482, %v520
    %v522 = vand.u32 %v338, 4294901760
    %523 = vmatmul.f32.gmra.mxu0 %v522
    %v524 = vpop.f32.mrf.mxu0
    %v525 = vadd.f32 %v488, %v524
    %526 = vdwg.mxu0
    %527 = vmatpush.msra.mxu0 0.0
    %528 = vmatpush.msra.mxu0 0.0
    %529 = vmatpush.msra.mxu0 0.0
    %530 = vmatpush.msra.mxu0 0.0
    %531 = vmatpush.msra.mxu0 0.0
    %532 = vmatpush.msra.mxu0 0.0
    %533 = vmatpush.msra.mxu0 0.0
    %534 = vmatpush.msra.mxu0 0.0
    %535 = vmatpush.msra.mxu0 0.0
    %536 = vmatpush.msra.mxu0 0.0
    %537 = vmatpush.msra.mxu0 0.0
    %538 = vmatpush.msra.mxu0 0.0
    %v539 = vand.u32 %v110, 4294901760
    %540 = vmatpush.msra.mxu0 %v539
    %v541 = vand.u32 %v109, 4294901760
    %542 = vmatpush.msra.mxu0 %v541
    %v543 = vand.u32 %v108, 4294901760
    %544 = vmatpush.msra.mxu0 %v543
    %v545 = vand.u32 %v107, 4294901760
    %546 = vmatpush.msra.mxu0 %v545
    %v547 = vand.u32 %v335, 4294901760
    %548 = vmatmul.f32.gmra.mxu0 %v547
    %v549 = vpop.f32.mrf.mxu0
    %v550 = vadd.f32 %v521, %v549
    %v551 = vand.u32 %v338, 4294901760
    %552 = vmatmul.f32.gmra.mxu0 %v551
    %v553 = vpop.f32.mrf.mxu0
    %v554 = vadd.f32 %v525, %v553
    %555 = vdwg.mxu0
    %v556 = vadd.f32 %v99, %v101
    %v557 = vadd.f32 %v100, %v102
    %v558 = vadd.f32 %v103, %v107
    %v559 = vadd.f32 %v104, %v108
    %v560 = vadd.f32 %v105, %v109
    %v561 = vadd.f32 %v106, %v110
    %v563 = vsel %vm111, %v556, 0
    %v566 = vsel %vm111, %v557, 0
    %568 = vmatpush.msra.mxu0 0.0
    %569 = vmatpush.msra.mxu0 0.0
    %570 = vmatpush.msra.mxu0 0.0
    %571 = vmatpush.msra.mxu0 0.0
    %572 = vmatpush.msra.mxu0 0.0
    %573 = vmatpush.msra.mxu0 0.0
    %574 = vmatpush.msra.mxu0 0.0
    %575 = vmatpush.msra.mxu0 0.0
    %576 = vmatpush.msra.mxu0 0.0
    %577 = vmatpush.msra.mxu0 0.0
    %578 = vmatpush.msra.mxu0 0.0
    %579 = vmatpush.msra.mxu0 0.0
    %v580 = vand.u32 %v561, 4294901760
    %581 = vmatpush.msra.mxu0 %v580
    %v582 = vand.u32 %v560, 4294901760
    %583 = vmatpush.msra.mxu0 %v582
    %v584 = vand.u32 %v559, 4294901760
    %585 = vmatpush.msra.mxu0 %v584
    %v586 = vand.u32 %v558, 4294901760
    %587 = vmatpush.msra.mxu0 %v586
    %v588 = vand.u32 %v563, 4294901760
    %v589 = vsub.f32 %v563, %v588
    %v590 = vand.u32 %v589, 4294901760
    %v591 = vsub.f32 %v589, %v590
    %v592 = vand.u32 %v591, 4294901760
    %593 = vmatmul.f32.gmra.mxu0 %v592
    %v594 = vpop.f32.mrf.mxu0
    %v595 = vadd.f32 0.0, %v594
    %v596 = vand.u32 %v566, 4294901760
    %v597 = vsub.f32 %v566, %v596
    %v598 = vand.u32 %v597, 4294901760
    %v599 = vsub.f32 %v597, %v598
    %v600 = vand.u32 %v599, 4294901760
    %601 = vmatmul.f32.gmra.mxu0 %v600
    %v602 = vpop.f32.mrf.mxu0
    %v603 = vadd.f32 0.0, %v602
    %604 = vdwg.mxu0
    %605 = vmatpush.msra.mxu0 0.0
    %606 = vmatpush.msra.mxu0 0.0
    %607 = vmatpush.msra.mxu0 0.0
    %608 = vmatpush.msra.mxu0 0.0
    %609 = vmatpush.msra.mxu0 0.0
    %610 = vmatpush.msra.mxu0 0.0
    %611 = vmatpush.msra.mxu0 0.0
    %612 = vmatpush.msra.mxu0 0.0
    %613 = vmatpush.msra.mxu0 0.0
    %614 = vmatpush.msra.mxu0 0.0
    %615 = vmatpush.msra.mxu0 0.0
    %616 = vmatpush.msra.mxu0 0.0
    %v617 = vand.u32 %v561, 4294901760
    %v618 = vsub.f32 %v561, %v617
    %v619 = vand.u32 %v618, 4294901760
    %v620 = vsub.f32 %v618, %v619
    %v621 = vand.u32 %v620, 4294901760
    %622 = vmatpush.msra.mxu0 %v621
    %v623 = vand.u32 %v560, 4294901760
    %v624 = vsub.f32 %v560, %v623
    %v625 = vand.u32 %v624, 4294901760
    %v626 = vsub.f32 %v624, %v625
    %v627 = vand.u32 %v626, 4294901760
    %628 = vmatpush.msra.mxu0 %v627
    %v629 = vand.u32 %v559, 4294901760
    %v630 = vsub.f32 %v559, %v629
    %v631 = vand.u32 %v630, 4294901760
    %v632 = vsub.f32 %v630, %v631
    %v633 = vand.u32 %v632, 4294901760
    %634 = vmatpush.msra.mxu0 %v633
    %v635 = vand.u32 %v558, 4294901760
    %v636 = vsub.f32 %v558, %v635
    %v637 = vand.u32 %v636, 4294901760
    %v638 = vsub.f32 %v636, %v637
    %v639 = vand.u32 %v638, 4294901760
    %640 = vmatpush.msra.mxu0 %v639
    %v641 = vand.u32 %v563, 4294901760
    %642 = vmatmul.f32.gmra.mxu0 %v641
    %v643 = vpop.f32.mrf.mxu0
    %v644 = vadd.f32 %v595, %v643
    %v645 = vand.u32 %v566, 4294901760
    %646 = vmatmul.f32.gmra.mxu0 %v645
    %v647 = vpop.f32.mrf.mxu0
    %v648 = vadd.f32 %v603, %v647
    %649 = vdwg.mxu0
    %650 = vmatpush.msra.mxu0 0.0
    %651 = vmatpush.msra.mxu0 0.0
    %652 = vmatpush.msra.mxu0 0.0
    %653 = vmatpush.msra.mxu0 0.0
    %654 = vmatpush.msra.mxu0 0.0
    %655 = vmatpush.msra.mxu0 0.0
    %656 = vmatpush.msra.mxu0 0.0
    %657 = vmatpush.msra.mxu0 0.0
    %658 = vmatpush.msra.mxu0 0.0
    %659 = vmatpush.msra.mxu0 0.0
    %660 = vmatpush.msra.mxu0 0.0
    %661 = vmatpush.msra.mxu0 0.0
    %v662 = vand.u32 %v561, 4294901760
    %v663 = vsub.f32 %v561, %v662
    %664 = vmatpush.msra.mxu0 %v663
    %v665 = vand.u32 %v560, 4294901760
    %v666 = vsub.f32 %v560, %v665
    %667 = vmatpush.msra.mxu0 %v666
    %v668 = vand.u32 %v559, 4294901760
    %v669 = vsub.f32 %v559, %v668
    %670 = vmatpush.msra.mxu0 %v669
    %v671 = vand.u32 %v558, 4294901760
    %v672 = vsub.f32 %v558, %v671
    %673 = vmatpush.msra.mxu0 %v672
    %v674 = vand.u32 %v563, 4294901760
    %v675 = vsub.f32 %v563, %v674
    %676 = vmatmul.f32.gmra.mxu0 %v675
    %v677 = vpop.f32.mrf.mxu0
    %v678 = vadd.f32 %v644, %v677
    %v679 = vand.u32 %v566, 4294901760
    %v680 = vsub.f32 %v566, %v679
    %681 = vmatmul.f32.gmra.mxu0 %v680
    %v682 = vpop.f32.mrf.mxu0
    %v683 = vadd.f32 %v648, %v682
    %684 = vdwg.mxu0
    %685 = vmatpush.msra.mxu0 0.0
    %686 = vmatpush.msra.mxu0 0.0
    %687 = vmatpush.msra.mxu0 0.0
    %688 = vmatpush.msra.mxu0 0.0
    %689 = vmatpush.msra.mxu0 0.0
    %690 = vmatpush.msra.mxu0 0.0
    %691 = vmatpush.msra.mxu0 0.0
    %692 = vmatpush.msra.mxu0 0.0
    %693 = vmatpush.msra.mxu0 0.0
    %694 = vmatpush.msra.mxu0 0.0
    %695 = vmatpush.msra.mxu0 0.0
    %696 = vmatpush.msra.mxu0 0.0
    %v697 = vand.u32 %v561, 4294901760
    %698 = vmatpush.msra.mxu0 %v697
    %v699 = vand.u32 %v560, 4294901760
    %700 = vmatpush.msra.mxu0 %v699
    %v701 = vand.u32 %v559, 4294901760
    %702 = vmatpush.msra.mxu0 %v701
    %v703 = vand.u32 %v558, 4294901760
    %704 = vmatpush.msra.mxu0 %v703
    %v705 = vand.u32 %v563, 4294901760
    %v706 = vsub.f32 %v563, %v705
    %v707 = vand.u32 %v706, 4294901760
    %708 = vmatmul.f32.gmra.mxu0 %v707
    %v709 = vpop.f32.mrf.mxu0
    %v710 = vadd.f32 %v678, %v709
    %v711 = vand.u32 %v566, 4294901760
    %v712 = vsub.f32 %v566, %v711
    %v713 = vand.u32 %v712, 4294901760
    %714 = vmatmul.f32.gmra.mxu0 %v713
    %v715 = vpop.f32.mrf.mxu0
    %v716 = vadd.f32 %v683, %v715
    %717 = vdwg.mxu0
    %718 = vmatpush.msra.mxu0 0.0
    %719 = vmatpush.msra.mxu0 0.0
    %720 = vmatpush.msra.mxu0 0.0
    %721 = vmatpush.msra.mxu0 0.0
    %722 = vmatpush.msra.mxu0 0.0
    %723 = vmatpush.msra.mxu0 0.0
    %724 = vmatpush.msra.mxu0 0.0
    %725 = vmatpush.msra.mxu0 0.0
    %726 = vmatpush.msra.mxu0 0.0
    %727 = vmatpush.msra.mxu0 0.0
    %728 = vmatpush.msra.mxu0 0.0
    %729 = vmatpush.msra.mxu0 0.0
    %v730 = vand.u32 %v561, 4294901760
    %v731 = vsub.f32 %v561, %v730
    %v732 = vand.u32 %v731, 4294901760
    %733 = vmatpush.msra.mxu0 %v732
    %v734 = vand.u32 %v560, 4294901760
    %v735 = vsub.f32 %v560, %v734
    %v736 = vand.u32 %v735, 4294901760
    %737 = vmatpush.msra.mxu0 %v736
    %v738 = vand.u32 %v559, 4294901760
    %v739 = vsub.f32 %v559, %v738
    %v740 = vand.u32 %v739, 4294901760
    %741 = vmatpush.msra.mxu0 %v740
    %v742 = vand.u32 %v558, 4294901760
    %v743 = vsub.f32 %v558, %v742
    %v744 = vand.u32 %v743, 4294901760
    %745 = vmatpush.msra.mxu0 %v744
    %v746 = vand.u32 %v563, 4294901760
    %747 = vmatmul.f32.gmra.mxu0 %v746
    %v748 = vpop.f32.mrf.mxu0
    %v749 = vadd.f32 %v710, %v748
    %v750 = vand.u32 %v566, 4294901760
    %751 = vmatmul.f32.gmra.mxu0 %v750
    %v752 = vpop.f32.mrf.mxu0
    %v753 = vadd.f32 %v716, %v752
    %754 = vdwg.mxu0
    %755 = vmatpush.msra.mxu0 0.0
    %756 = vmatpush.msra.mxu0 0.0
    %757 = vmatpush.msra.mxu0 0.0
    %758 = vmatpush.msra.mxu0 0.0
    %759 = vmatpush.msra.mxu0 0.0
    %760 = vmatpush.msra.mxu0 0.0
    %761 = vmatpush.msra.mxu0 0.0
    %762 = vmatpush.msra.mxu0 0.0
    %763 = vmatpush.msra.mxu0 0.0
    %764 = vmatpush.msra.mxu0 0.0
    %765 = vmatpush.msra.mxu0 0.0
    %766 = vmatpush.msra.mxu0 0.0
    %v767 = vand.u32 %v561, 4294901760
    %768 = vmatpush.msra.mxu0 %v767
    %v769 = vand.u32 %v560, 4294901760
    %770 = vmatpush.msra.mxu0 %v769
    %v771 = vand.u32 %v559, 4294901760
    %772 = vmatpush.msra.mxu0 %v771
    %v773 = vand.u32 %v558, 4294901760
    %774 = vmatpush.msra.mxu0 %v773
    %v775 = vand.u32 %v563, 4294901760
    %776 = vmatmul.f32.gmra.mxu0 %v775
    %v777 = vpop.f32.mrf.mxu0
    %v778 = vadd.f32 %v749, %v777
    %v779 = vand.u32 %v566, 4294901760
    %780 = vmatmul.f32.gmra.mxu0 %v779
    %v781 = vpop.f32.mrf.mxu0
    %v782 = vadd.f32 %v753, %v781
    %783 = vdwg.mxu0
    %v784 = vld [vmem:[#allocation2] sm:$0xff]
    %v785 = vld [vmem:[#allocation2 + $0x8] sm:$0xff]
    %v786 = vsub.f32 %v328, %v550
    %v787 = vsub.f32 %v332, %v554
    %v788 = vadd.f32 %v784, %v786
    %v789 = vadd.f32 %v785, %v787
    %vm790 = vcmask 785408
    %791 = vst.msk [vmem:[#allocation2] sm:$0xff] %vm790, %v788
    %792 = vst.msk [vmem:[#allocation2 + $0x8] sm:$0xff] %vm790, %v789
    %v793 = vld [vmem:[#allocation3] sm:$0xff]
    %v794 = vld [vmem:[#allocation3 + $0x8] sm:$0xff]
    %v795 = vsub.f32 %v778, %v328
    %v796 = vsub.f32 %v782, %v332
    %v797 = vsub.f32 %v795, %v550
    %v798 = vsub.f32 %v796, %v554
    %v799 = vadd.f32 %v793, %v797
    %v800 = vadd.f32 %v794, %v798
    %801 = vst.msk [vmem:[#allocation3] sm:$0xff] %vm790, %v799
    %802 = vst.msk [vmem:[#allocation3 + $0x8] sm:$0xff] %vm790, %v800
    // Predicated region
    $region46: #{tpu_custom_call.1} parent=1 // pred_check
      %p803 = pneg %p90
    $region47: #{tpu_custom_call.1} parent=1 // pred_check_branch
      %805 = sbr.rel (%p803) target = $region49
    $region48: #{tpu_custom_call.1} parent=1 // pred_region
      %v806 = vld [vmem:[#allocation2] sm:$0xff]
      %v807 = vld [vmem:[#allocation2 + $0x8] sm:$0xff]
      %v808 = vld [vmem:[%s4] sm:$0x1]
      %v810 = vperm.slane %v808, 0
      %v812 = vadd.f32 %v806, %v810
      %v813 = vadd.f32 %v807, %v810
      %814 = vst.msk [vmem:[#allocation12] sm:$0xff] %vm790, %v812
      %815 = vst.msk [vmem:[#allocation12 + $0x8] sm:$0xff] %vm790, %v813
      %v816 = vld [vmem:[#allocation3] sm:$0xff]
      %v817 = vld [vmem:[#allocation3 + $0x8] sm:$0xff]
      %v818 = vld [vmem:[%s5] sm:$0x1]
      %v820 = vperm.slane %v818, 0
      %v822 = vadd.f32 %v816, %v820
      %v823 = vadd.f32 %v817, %v820
      %824 = vst.msk [vmem:[#allocation13] sm:$0xff] %vm790, %v822
      %825 = vst.msk [vmem:[#allocation13 + $0x8] sm:$0xff] %vm790, %v823
    $region49: #{tpu_custom_call.1} parent=1 // pred_fallthru
      _
    // Predicated region
    $region50: #{tpu_custom_call.1} parent=1 // pred_check
      _
    $region51: #{tpu_custom_call.1} parent=1 // pred_check_branch
      %827 = sbr.rel (0) target = $region53
    $region52: #{tpu_custom_call.1} parent=1 // pred_region
      %829 = vsyncadd [#allocation6], 0
      %s830 = sshll.u32 [#allocation12], 4
      %s831 = int_to_ptr.vmem [resolvable:$true] %s830
      %s832 = sshll.u32 %s6, 4
      %s833 = int_to_ptr.hbm [resolvable:$true] %s832
      %838 = dma.vmem_to_hbm [thread:$0]  %s831, 256, %s833, [#allocation6], 128, 128, 8
    $region53: #{tpu_custom_call.1} parent=1 // pred_fallthru
      _
    // Predicated region
    $region54: #{tpu_custom_call.1} parent=1 // pred_check
      _
    $region55: #{tpu_custom_call.1} parent=1 // pred_check_branch
      %840 = sbr.rel (0) target = $region57
    $region56: #{tpu_custom_call.1} parent=1 // pred_region
      %842 = vsyncadd [#allocation14], 0
      %s843 = sshll.u32 [#allocation13], 4
      %s844 = int_to_ptr.vmem [resolvable:$true] %s843
      %s845 = sshll.u32 %s7, 4
      %s846 = int_to_ptr.hbm [resolvable:$true] %s845
      %851 = dma.vmem_to_hbm [thread:$0]  %s844, 256, %s846, [#allocation14], 128, 128, 8
    $region57: #{tpu_custom_call.1} parent=1 // pred_fallthru
      _
    // Predicated region
    $region58: #{tpu_custom_call.1} parent=1 // pred_check
      _
    $region59: #{tpu_custom_call.1} parent=1 // pred_check_branch
      %853 = sbr.rel (0) target = $region61
    $region60: #{tpu_custom_call.1} parent=1 // pred_region
      %855 = dma.done [#allocation6], 256
    $region61: #{tpu_custom_call.1} parent=1 // pred_fallthru
      _
    // Predicated region
    $region62: #{tpu_custom_call.1} parent=1 // pred_check
      _
    $region63: #{tpu_custom_call.1} parent=1 // pred_check_branch
      %857 = sbr.rel (0) target = $region65
    $region64: #{tpu_custom_call.1} parent=1 // pred_region
      %859 = dma.done [#allocation14], 256
    $region65: #{tpu_custom_call.1} parent=1 // pred_fallthru
      _
    %860 = vsyncpa [#allocation5], 1
    %861 = vsyncpa [#allocation8], 1
    %862 = vsyncpa [#allocation11], 1
    %863 = vsyncpa [#allocation6], 1
    %864 = vsyncpa [#allocation14], 1

</llo_original>
